<compile_context>
chip_gen: v7x
topology: tpu7x:2x2x1
jax: 0.10.0
libtpu: 0.0.40
codegen_flags: <defaults>
</compile_context>

<pallas_src>
import functools
import math

import jax
import jax.numpy as jnp
from jax import lax
from jax.experimental import pallas as pl
from jax.experimental.pallas import tpu as pltpu


def _rmsnorm_kernel(x_ref, w_ref, o_ref, *, eps, inv_dim, exact_rounding):
    # x_ref: (tile_rows, dim)   w_ref: (1, dim)   o_ref: (tile_rows, dim)
    x_f32 = x_ref[...].astype(jnp.float32)
    # Block last dim == true dim, so the sum covers exactly the real features.
    mean_sq = jnp.sum(x_f32 * x_f32, axis=-1, keepdims=True) * inv_dim
    inv_rms = lax.rsqrt(mean_sq + eps)
    w_f32 = w_ref[...].astype(jnp.float32)
    if exact_rounding:
        # Bit-exact PyTorch path: normalize in f32, round to x.dtype, then * weight.
        normed = (x_f32 * inv_rms).astype(x_ref.dtype)
        o_ref[...] = (normed.astype(jnp.float32) * w_f32).astype(o_ref.dtype)
    else:
        # Cast-trimmed path (keeps v5e's VALU off the critical path); tiny
        # rounding difference vs PyTorch's intermediate .type_as(x).
        o_ref[...] = (x_f32 * inv_rms * w_f32).astype(o_ref.dtype)


def _round_up(v, m):
    return ((v + m - 1) // m) * m


def _round_down(v, m):
    return (v // m) * m


def rmsnorm(x, weight, eps=1e-6, tile_rows=None, exact_rounding=True):
    """x: (..., dim) array; weight: (dim,). Returns PyTorch-equivalent RMSNorm."""
    orig_shape = x.shape
    dim = orig_shape[-1]
    rows = int(math.prod(orig_shape[:-1]))
    x2d = x.reshape(rows, dim)
    w2d = weight.reshape(1, dim)

    # PyTorch promotion of (x-typed normed) * weight.
    out_dtype = jnp.promote_types(x.dtype, weight.dtype)
    in_bytes = jnp.dtype(x.dtype).itemsize
    out_bytes = jnp.dtype(out_dtype).itemsize
    w_bytes = jnp.dtype(weight.dtype).itemsize

    # Physical VMEM per TensorCore (v5e/v6e: 128 MiB, v7x: 64 MiB); conservative
    # fallback if the query is unavailable.
    try:
        vmem_cap = int(pltpu.get_tpu_info().vmem_capacity_bytes)
    except Exception:
        vmem_cap = 64 << 20
    vmem_hard_cap = max(16 << 20, vmem_cap - (8 << 20))  # leave Mosaic headroom

    # Sublane packing per input dtype: 8 (f32), 16 (bf16), 32 (int8/fp8).
    sublane = max(8, 32 // in_bytes)

    # Per-row bytes: double-buffered in + out tiles plus in-kernel f32
    # intermediates (x_f32 / normed can each be a full-tile f32 temporary).
    bytes_per_row = dim * (2 * (in_bytes + out_bytes) + 2 * 4)
    tile_budget = min(48 << 20, vmem_cap // 2)

    if tile_rows is None:
        tile_rows = max(sublane, tile_budget // max(bytes_per_row, 1))
    tile_rows = max(sublane, _round_down(int(tile_rows), sublane))
    # No point in a tile larger than the (sublane-rounded) row count.
    tile_rows = min(tile_rows, max(sublane, _round_up(rows, sublane)))

    # Ensure a few grid steps when rows allow, so v7x's two TensorCores both
    # get work and input/output DMAs can pipeline.
    min_steps = 4
    if rows >= min_steps * sublane and pl.cdiv(rows, tile_rows) < min_steps:
        tile_rows = max(sublane, _round_down(rows // min_steps, sublane))

    grid = (pl.cdiv(rows, tile_rows),)

    tile_elems = tile_rows * dim
    vmem_need = (
        2 * tile_elems * (in_bytes + out_bytes)  # double-buffered in/out tiles
        + 2 * tile_elems * 4                     # in-kernel f32 temporaries
        + 2 * dim * w_bytes                      # weight block
        + (4 << 20)                              # scratch headroom
    )
    vmem_limit = int(min(max(vmem_need, 16 << 20), vmem_hard_cap))

    kernel = functools.partial(
        _rmsnorm_kernel,
        eps=float(eps),
        inv_dim=1.0 / float(dim),
        exact_rounding=exact_rounding,
    )

    out2d = pl.pallas_call(
        kernel,
        out_shape=jax.ShapeDtypeStruct((rows, dim), out_dtype),
        grid_spec=pltpu.PrefetchScalarGridSpec(
            num_scalar_prefetch=0,
            grid=grid,
            in_specs=[
                # Row-tiled input; last block may be partial (masked by Pallas).
                pl.BlockSpec((tile_rows, dim), lambda i: (i, 0)),
                # Weight: whole feature vector, resident across the grid.
                pl.BlockSpec((1, dim), lambda i: (0, 0)),
            ],
            out_specs=pl.BlockSpec((tile_rows, dim), lambda i: (i, 0)),
        ),
        compiler_params=pltpu.CompilerParams(
            dimension_semantics=("parallel",),
            vmem_limit_bytes=vmem_limit,
        ),
    )(x2d, w2d)

    return out2d.reshape(orig_shape[:-1] + (dim,))


if __name__ == "__main__":
    batch, seq, hidden = 2, 8, 32
    key = jax.random.PRNGKey(0)
    x = jax.random.normal(key, (batch, seq, hidden), dtype=jnp.float32)

    # Deterministic parameter init: nn.Parameter(torch.ones(dim))
    weight = jnp.ones((hidden,), dtype=jnp.float32)
    eps = 1e-6

    out = jax.block_until_ready(rmsnorm(x, weight, eps=eps))

    # Reference check in plain JAX (mirrors the PyTorch math).
    x_f32 = x.astype(jnp.float32)
    ref = x_f32 * lax.rsqrt(jnp.mean(x_f32 * x_f32, axis=-1, keepdims=True) + eps)
    ref = ref.astype(x.dtype) * weight
    assert out.shape == ref.shape, "shape mismatch vs reference"
    assert jnp.allclose(out, ref, atol=1e-5, rtol=1e-5), "mismatch vs reference"

    print("KERNEL_OK")
</pallas_src>

<mosaic_0001>
module attributes {stable_mosaic.version = 11 : i64} {
  func.func @_rmsnorm_kernel(%arg0: i32, %arg1: memref<16x32xf32, #tpu.memory_space<vmem>>, %arg2: memref<1x32xf32, #tpu.memory_space<vmem>>, %arg3: memref<16x32xf32, #tpu.memory_space<vmem>>) attributes {dimension_semantics = [#tpu.dimension_semantics<parallel>], iteration_bounds = array<i64: 1>, scalar_prefetch = 0 : i64, scratch_operands = 0 : i64, tpu.core_type = #tpu.core_type<tc>, window_params = [{transform_indices = @transform_0, window_bounds = array<i64: 16, 32>}, {pipeline_mode = #tpu.pipeline_mode<synchronous>, transform_indices = @transform_1, window_bounds = array<i64: 1, 32>}, {transform_indices = @transform_2, window_bounds = array<i64: 16, 32>}]} {
    %c0 = arith.constant 0 : index
    %c0_0 = arith.constant 0 : index
    %0 = vector.load %arg1[%c0, %c0_0] : memref<16x32xf32, #tpu.memory_space<vmem>>, vector<16x32xf32>
    %1 = arith.mulf %0, %0 : vector<16x32xf32>
    %cst = arith.constant dense<0.000000e+00> : vector<16xf32>
    %2 = vector.multi_reduction <add>, %1, %cst [1] : vector<16x32xf32> to vector<16xf32>
    %3 = vector.shape_cast %2 : vector<16xf32> to vector<16x1xf32>
    %cst_1 = arith.constant 3.125000e-02 : f32
    %4 = vector.broadcast %cst_1 : f32 to vector<16x1xf32>
    %5 = arith.mulf %3, %4 : vector<16x1xf32>
    %cst_2 = arith.constant 9.99999997E-7 : f32
    %6 = vector.broadcast %cst_2 : f32 to vector<16x1xf32>
    %7 = arith.addf %5, %6 : vector<16x1xf32>
    %8 = math.rsqrt %7 : vector<16x1xf32>
    %c0_3 = arith.constant 0 : index
    %c0_4 = arith.constant 0 : index
    %9 = vector.load %arg2[%c0_3, %c0_4] : memref<1x32xf32, #tpu.memory_space<vmem>>, vector<1x32xf32>
    %10 = vector.broadcast %8 : vector<16x1xf32> to vector<16x32xf32>
    %11 = arith.mulf %0, %10 : vector<16x32xf32>
    %12 = vector.broadcast %9 : vector<1x32xf32> to vector<16x32xf32>
    %13 = arith.mulf %11, %12 : vector<16x32xf32>
    %c0_5 = arith.constant 0 : index
    %c0_6 = arith.constant 0 : index
    %14 = vector.load %arg3[%c0_5, %c0_6] : memref<16x32xf32, #tpu.memory_space<vmem>>, vector<16x32xf32>
    tpu.vector_store %arg3[%c0_5, %c0_6], %13 {strides = array<i32>} : memref<16x32xf32, #tpu.memory_space<vmem>>, vector<16x32xf32>,
    return
  }
  func.func @transform_0(%arg0: i32) -> (i32, i32) {
    %c0_i32 = arith.constant 0 : i32
    %c0_i32_0 = arith.constant 0 : i32
    return %arg0, %c0_i32 : i32, i32
  }
  func.func @transform_1(%arg0: i32) -> (i32, i32) {
    %c0_i32 = arith.constant 0 : i32
    %c0_i32_0 = arith.constant 0 : i32
    %c0_i32_1 = arith.constant 0 : i32
    return %c0_i32, %c0_i32_0 : i32, i32
  }
  func.func @transform_2(%arg0: i32) -> (i32, i32) {
    %c0_i32 = arith.constant 0 : i32
    %c0_i32_0 = arith.constant 0 : i32
    return %arg0, %c0_i32 : i32, i32
  }
}

</mosaic_0001>

<llo_original>
// kernel: tpu_custom_call.1
$region0: #{tpu_custom_call.1}
  #allocation0 [shape = 'u32[]', space=smem, size = 0x4, offset = 0x4, fixed_abs, tag = 'smem constant byte address 0x4 - core index']
  #allocation1 [shape = 'u32[144,128]{1,0:T(1,128)}', space=vmem, size = 0x12000, scoped, tag = 'internal scratch']
  %s0 = inlined_call_operand.hbm [shape: f32[16,32], index: 0, kind: input, shape index: {}]
  %s1 = inlined_call_operand.vmem [shape: f32[1,32], index: 1, kind: input, shape index: {}]
  %s2 = inlined_call_operand.hbm [shape: f32[16,32], index: 2, kind: output, shape index: {}]
  %s3 = sld [smem:[#allocation0]]
  $region22: #{tpu_custom_call.1} parent=0
    _
  %s5 = ssub.s32 1, %s3
  %s6 = scalar_select 0, %s5, %s3
  $region1: #{tpu_custom_call.1} parent=0
    #allocation2 [shape = 'u8[8192]{0}', space=vmem, size = 0x2000, scoped, tag = 'input window, operand 0, single buffered']
    #allocation3 [shape = 's32[1]{0}', space=sflag, size = 0x4, scoped, tag = 'scoped memory for tpu_custom_call.1']
    #allocation4 [shape = 's32[1]{0}', space=sflag, size = 0x4, scoped, tag = 'scoped memory for tpu_custom_call.1']
    #allocation5 [shape = 'u8[8192]{0}', space=vmem, size = 0x2000, scoped, tag = 'output window, operand 0, single buffered']
    %7 = vsyncpa [#allocation3], 0
    %8 = vsyncpa [#allocation4], 0
    // Predicated region
    $region2: #{tpu_custom_call.1} parent=1 // pred_check
      _
    $region3: #{tpu_custom_call.1} parent=1 // pred_check_branch
      %10 = sbr.rel (0) target = $region5
    $region4: #{tpu_custom_call.1} parent=1 // pred_region
      %s12 = ssub.s32 256, 256
      %13 = vsyncadd [#allocation3], %s12
      %s14 = sshll.u32 [#allocation2], 4
      %s15 = int_to_ptr.vmem [resolvable:$true] %s14
      %20 = dma.hbm_to_vmem [thread:$0]  %s0, 256, %s15, [#allocation3], 128, 128, 8
    $region5: #{tpu_custom_call.1} parent=1 // pred_fallthru
      _
    // Predicated region
    $region6: #{tpu_custom_call.1} parent=1 // pred_check
      _
    $region7: #{tpu_custom_call.1} parent=1 // pred_check_branch
      %22 = sbr.rel (0) target = $region9
    $region8: #{tpu_custom_call.1} parent=1 // pred_region
      _
    $region9: #{tpu_custom_call.1} parent=1 // pred_fallthru
      _
    // Predicated region
    $region10: #{tpu_custom_call.1} parent=1 // pred_check
      _
    $region11: #{tpu_custom_call.1} parent=1 // pred_check_branch
      %24 = sbr.rel (0) target = $region13
    $region12: #{tpu_custom_call.1} parent=1 // pred_region
      %25 = dma.done [#allocation3], 256
    $region13: #{tpu_custom_call.1} parent=1 // pred_fallthru
      _
    %v26 = vld [vmem:[#allocation2] sm:$0xff]
    %v27 = vld [vmem:[#allocation2 + $0x8] sm:$0xff]
    %v28 = vmul.f32 %v26, %v26
    %v29 = vmul.f32 %v27, %v27
    %vm30 = vcmask 261120
    %v31 = vsel %vm30, %v28, 0.0
    %32 = vadd.xlane.f32.xlu0 %v31
    %v33 = vpop.xlane.xlu0 %32
    %v34 = vsel %vm30, %v29, 0.0
    %35 = vadd.xlane.f32.xlu0 %v34
    %v36 = vpop.xlane.xlu0 %35
    %v37 = vmul.f32 %v33, 0.03125
    %v38 = vmul.f32 %v36, 0.03125
    %v39 = vadd.f32 %v37, 1e-06
    %v40 = vadd.f32 %v38, 1e-06
    %v41 = vrsqrt.pop %v39
    %v42 = vrsqrt.pop %v40
    %v43 = vld [vmem:[%s1] sm:$0x1]
    %v44 = vmul.f32 %v26, %v41
    %v45 = vmul.f32 %v27, %v42
    %v47 = vlaneseq
    %v48 = vshrl.u32 %v47, 7
    %v49 = vsub.s32 0, %v48
    %v50 = vrot.slane %v43, %v49
    %v52 = vmul.f32 %v44, %v50
    %v53 = vmul.f32 %v45, %v50
    %54 = vst.msk [vmem:[#allocation5] sm:$0xff] %vm30, %v52
    %55 = vst.msk [vmem:[#allocation5 + $0x8] sm:$0xff] %vm30, %v53
    // Predicated region
    $region14: #{tpu_custom_call.1} parent=1 // pred_check
      _
    $region15: #{tpu_custom_call.1} parent=1 // pred_check_branch
      %57 = sbr.rel (0) target = $region17
    $region16: #{tpu_custom_call.1} parent=1 // pred_region
      %s59 = ssub.s32 256, 256
      %60 = vsyncadd [#allocation4], %s59
      %s61 = sshll.u32 [#allocation5], 4
      %s62 = int_to_ptr.vmem [resolvable:$true] %s61
      %67 = dma.vmem_to_hbm [thread:$0]  %s62, 256, %s2, [#allocation4], 128, 128, 8
    $region17: #{tpu_custom_call.1} parent=1 // pred_fallthru
      _
    // Predicated region
    $region18: #{tpu_custom_call.1} parent=1 // pred_check
      _
    $region19: #{tpu_custom_call.1} parent=1 // pred_check_branch
      %69 = sbr.rel (0) target = $region21
    $region20: #{tpu_custom_call.1} parent=1 // pred_region
      %70 = dma.done [#allocation4], 256
    $region21: #{tpu_custom_call.1} parent=1 // pred_fallthru
      _
    %71 = vsyncpa [#allocation3], 1
    %72 = vsyncpa [#allocation4], 1

</llo_original>
